<compile_context>
chip_gen: v5e
topology: v5e:2x2
jax: 0.10.0
libtpu: 0.0.40
codegen_flags: <defaults>
</compile_context>

<pallas_src>
import functools

import jax
import jax.numpy as jnp
from jax.experimental import pallas as pl
from jax.experimental.pallas import tpu as pltpu


def _ce_oh_kernel(x_ref, lbl_ref, out_ref, acc_ref, *, hw, tile_hw,
                  p_tile_stride):
    """Per-tile: log_softmax over the class (sublane) axis, dot with label,
    accumulate lane partial sums; collapse to a scalar only at the end."""
    p = pl.program_id(0)    # group (exact 2-way split over H*W tiles or batch)
    nn = pl.program_id(1)   # batch element within this group
    t = pl.program_id(2)    # H*W tile within this group

    @pl.when((nn == 0) & (t == 0))
    def _init():
        acc_ref[...] = jnp.zeros_like(acc_ref)

    x = x_ref[...].astype(jnp.float32)        # (C, tile_hw)
    lbl = lbl_ref[...].astype(jnp.float32)    # (C, tile_hw)

    # Numerically stable log-softmax over the class axis, without
    # materializing the full log_prob tile:
    #   sum_c lbl_c * (x_c - lse) = sum_c(x_c * lbl_c) - lse * sum_c(lbl_c)
    m = jnp.max(x, axis=0, keepdims=True)                            # (1, tile_hw)
    lse = m + jnp.log(jnp.sum(jnp.exp(x - m), axis=0, keepdims=True))
    contrib = (jnp.sum(x * lbl, axis=0, keepdims=True)
               - lse * jnp.sum(lbl, axis=0, keepdims=True))          # (1, tile_hw)

    # Mask only the contrib row for lanes beyond the real H*W extent (ragged
    # last tile).  Garbage/NaN in the unselected branch does not propagate.
    col0 = (p * p_tile_stride + t) * tile_hw
    cols = col0 + jax.lax.broadcasted_iota(jnp.int32, (1, tile_hw), 1)
    contrib = jnp.where(cols < hw, contrib, 0.0)

    acc_ref[...] += contrib                                          # lane partials

    @pl.when((nn == pl.num_programs(1) - 1) & (t == pl.num_programs(2) - 1))
    def _finish():
        total = jnp.sum(acc_ref[...], axis=1, keepdims=True)         # (1, 1)
        out_ref[...] = jnp.broadcast_to(total, out_ref.shape)


@functools.partial(jax.jit, static_argnames=("block_bytes",))
def cross_entropy_oh(x_nchw, label_nchw, block_bytes=8 * 1024 * 1024):
    """Equivalent of CrossEntropyOH().forward(input, label) for NCHW tensors."""
    n, c, h, w = x_nchw.shape
    hw = h * w

    # Free reshape (contiguous trailing dims merge) -- no transpose, no pad.
    x = x_nchw.reshape(n, c, hw)
    lbl = label_nchw.reshape(n, c, hw)

    x_bpe = x.dtype.itemsize
    l_bpe = lbl.dtype.itemsize

    # Generation-aware VMEM budget: ~48 MiB on v7x (64 MiB phys), ~96 MiB on
    # v5e/v6e (128 MiB phys).  Fall back to the v7x-safe value if unknown.
    try:
        vmem_cap = int(pltpu.get_tpu_info().vmem_capacity_bytes)
    except Exception:
        vmem_cap = 64 * 1024 * 1024
    budget = (vmem_cap * 3) // 4

    # Per-lane VMEM cost: 2 double-buffered input blocks (x + label, C sublane
    # rows each) plus the f32 accumulator, which physically pads to 8 sublanes.
    per_lane = 2 * c * (x_bpe + l_bpe) + 8 * 4
    hw_padded = -(-hw // 128) * 128

    tile_hw = (budget // per_lane) // 128 * 128                       # VMEM cap
    tile_hw = min(tile_hw,
                  (block_bytes // (c * max(x_bpe, l_bpe))) // 128 * 128)  # block cap
    tile_hw = max(128, min(tile_hw, hw_padded))
    # TODO(synk): for very large C (a single C x 128 column slab no longer fits
    # the VMEM budget) an online-softmax loop tiling C would be needed.

    hw_tiles = -(-hw // tile_hw)

    # Exact 2-way split only (no clamped/duplicated blocks, balanced work for
    # v7x megacore; on 1-TC chips the total grid-step count is unchanged).
    if hw_tiles % 2 == 0:
        num_groups = 2
        tiles_per_group, batch_per_group = hw_tiles // 2, n
        p_tile_stride, split_hw = hw_tiles // 2, True
    elif n % 2 == 0:
        num_groups = 2
        tiles_per_group, batch_per_group = hw_tiles, n // 2
        p_tile_stride, split_hw = 0, False
    else:
        num_groups = 1
        tiles_per_group, batch_per_group = hw_tiles, n
        p_tile_stride, split_hw = 0, True

    if split_hw:
        def in_map(p, nn, t):
            return (nn, 0, p * tiles_per_group + t)
    else:
        def in_map(p, nn, t):
            return (p * batch_per_group + nn, 0, t)

    kernel = functools.partial(_ce_oh_kernel, hw=hw, tile_hw=tile_hw,
                               p_tile_stride=p_tile_stride)

    # VMEM limit derived from the actual footprint (+ slack), not hard-coded.
    footprint = (2 * c * tile_hw * (x_bpe + l_bpe)   # double-buffered inputs
                 + 8 * tile_hw * 4                   # padded lane accumulator
                 + 2 * 8 * 128 * 4)                  # output block
    vmem_limit = int(min(vmem_cap, footprint + 4 * 1024 * 1024))

    partials = pl.pallas_call(
        kernel,
        out_shape=jax.ShapeDtypeStruct((num_groups, 1, 128), jnp.float32),
        grid_spec=pltpu.PrefetchScalarGridSpec(
            num_scalar_prefetch=0,
            grid=(num_groups, batch_per_group, tiles_per_group),
            in_specs=[
                pl.BlockSpec((None, c, tile_hw), in_map),
                pl.BlockSpec((None, c, tile_hw), in_map),
            ],
            out_specs=pl.BlockSpec((None, 1, 128), lambda p, nn, t: (p, 0, 0)),
            scratch_shapes=[pltpu.VMEM((1, tile_hw), jnp.float32)],
        ),
        compiler_params=pltpu.CompilerParams(
            dimension_semantics=("parallel", "arbitrary", "arbitrary"),
            vmem_limit_bytes=vmem_limit,
        ),
    )(x, lbl)

    total = jnp.sum(partials[:, 0, 0])
    return -total / jnp.float32(n)


def _reference(x_nchw, label_nchw):
    log_prob = jax.nn.log_softmax(x_nchw.astype(jnp.float32), axis=1)
    return -jnp.sum(log_prob * label_nchw.astype(jnp.float32)) / x_nchw.shape[0]


if __name__ == "__main__":
    key = jax.random.PRNGKey(0)
    k_x, k_l = jax.random.split(key)

    N, C, H, W = 2, 4, 16, 16
    x = jax.random.normal(k_x, (N, C, H, W), dtype=jnp.float32)

    # deterministic one-hot label over the channel dim
    cls = jax.random.randint(k_l, (N, H, W), 0, C)
    label = jax.nn.one_hot(cls, C, dtype=jnp.float32)        # (N, H, W, C)
    label = jnp.transpose(label, (0, 3, 1, 2))               # -> NCHW

    loss = cross_entropy_oh(x, label)
    jax.block_until_ready(loss)

    ref = _reference(x, label)
    assert jnp.allclose(loss, ref, rtol=1e-5, atol=1e-4), (loss, ref)

    print("KERNEL_OK")
</pallas_src>

<mosaic_0001>
module attributes {stable_mosaic.version = 11 : i64} {
  func.func @_ce_oh_kernel(%arg0: i32, %arg1: i32, %arg2: i32, %arg3: memref<1x4x256xf32, #tpu.memory_space<vmem>>, %arg4: memref<1x4x256xf32, #tpu.memory_space<vmem>>, %arg5: memref<1x1x128xf32, #tpu.memory_space<vmem>>, %arg6: memref<1x256xf32, #tpu.memory_space<vmem>>) attributes {dimension_semantics = [#tpu.dimension_semantics<parallel>, #tpu.dimension_semantics<arbitrary>, #tpu.dimension_semantics<arbitrary>], iteration_bounds = array<i64: 2, 1, 1>, scalar_prefetch = 0 : i64, scratch_operands = 1 : i64, tpu.core_type = #tpu.core_type<tc>, window_params = [{transform_indices = @transform_0, window_bounds = array<i64: 1, 4, 256>}, {transform_indices = @transform_1, window_bounds = array<i64: 1, 4, 256>}, {transform_indices = @transform_2, window_bounds = array<i64: 1, 1, 128>}]} {
    %c0_i32 = arith.constant 0 : i32
    %0 = arith.cmpi eq, %arg1, %c0_i32 : i32
    %c0_i32_0 = arith.constant 0 : i32
    %1 = arith.cmpi eq, %arg2, %c0_i32_0 : i32
    %2 = arith.andi %0, %1 : i1
    %3 = arith.extui %2 : i1 to i32
    %c0_i32_1 = arith.constant 0 : i32
    %4 = arith.cmpi ne, %3, %c0_i32_1 : i32
    scf.if %4 {
      %cst_20 = arith.constant 0.000000e+00 : f32
      %43 = vector.broadcast %cst_20 : f32 to vector<1x256xf32>
      %c0_21 = arith.constant 0 : index
      %c0_22 = arith.constant 0 : index
      %44 = vector.load %arg6[%c0_21, %c0_22] : memref<1x256xf32, #tpu.memory_space<vmem>>, vector<1x256xf32>
      tpu.vector_store %arg6[%c0_21, %c0_22], %43 {strides = array<i32>} : memref<1x256xf32, #tpu.memory_space<vmem>>, vector<1x256xf32>,
    } else {
    }
    %c0 = arith.constant 0 : index
    %c0_2 = arith.constant 0 : index
    %c0_3 = arith.constant 0 : index
    %5 = vector.load %arg3[%c0, %c0_2, %c0_3] : memref<1x4x256xf32, #tpu.memory_space<vmem>>, vector<1x4x256xf32>
    %6 = vector.shape_cast %5 : vector<1x4x256xf32> to vector<4x256xf32>
    %c0_4 = arith.constant 0 : index
    %c0_5 = arith.constant 0 : index
    %c0_6 = arith.constant 0 : index
    %7 = vector.load %arg4[%c0_4, %c0_5, %c0_6] : memref<1x4x256xf32, #tpu.memory_space<vmem>>, vector<1x4x256xf32>
    %8 = vector.shape_cast %7 : vector<1x4x256xf32> to vector<4x256xf32>
    %cst = arith.constant dense<0xFF800000> : vector<256xf32>
    %9 = vector.multi_reduction <maximumf>, %6, %cst [0] : vector<4x256xf32> to vector<256xf32>
    %10 = vector.shape_cast %9 : vector<256xf32> to vector<1x256xf32>
    %11 = vector.broadcast %10 : vector<1x256xf32> to vector<4x256xf32>
    %12 = arith.subf %6, %11 : vector<4x256xf32>
    %13 = math.exp %12 : vector<4x256xf32>
    %cst_7 = arith.constant dense<0.000000e+00> : vector<256xf32>
    %14 = vector.multi_reduction <add>, %13, %cst_7 [0] : vector<4x256xf32> to vector<256xf32>
    %15 = vector.shape_cast %14 : vector<256xf32> to vector<1x256xf32>
    %16 = math.log %15 : vector<1x256xf32>
    %17 = arith.addf %10, %16 : vector<1x256xf32>
    %18 = arith.mulf %6, %8 : vector<4x256xf32>
    %cst_8 = arith.constant dense<0.000000e+00> : vector<256xf32>
    %19 = vector.multi_reduction <add>, %18, %cst_8 [0] : vector<4x256xf32> to vector<256xf32>
    %20 = vector.shape_cast %19 : vector<256xf32> to vector<1x256xf32>
    %cst_9 = arith.constant dense<0.000000e+00> : vector<256xf32>
    %21 = vector.multi_reduction <add>, %8, %cst_9 [0] : vector<4x256xf32> to vector<256xf32>
    %22 = vector.shape_cast %21 : vector<256xf32> to vector<1x256xf32>
    %23 = arith.mulf %17, %22 : vector<1x256xf32>
    %24 = arith.subf %20, %23 : vector<1x256xf32>
    %c0_i32_10 = arith.constant 0 : i32
    %25 = arith.muli %arg0, %c0_i32_10 : i32
    %26 = arith.addi %25, %arg2 : i32
    %c256_i32 = arith.constant 256 : i32
    %27 = arith.muli %26, %c256_i32 : i32
    %28 = tpu.iota {dimensions = array<i32: 1>} : vector<1x256xi32>
    %29 = vector.broadcast %27 : i32 to vector<1x256xi32>
    %30 = arith.addi %29, %28 : vector<1x256xi32>
    %c256_i32_11 = arith.constant 256 : i32
    %31 = vector.broadcast %c256_i32_11 : i32 to vector<1x256xi32>
    %32 = arith.cmpi slt, %30, %31 : vector<1x256xi32>
    %cst_12 = arith.constant 0.000000e+00 : f32
    %33 = vector.broadcast %cst_12 : f32 to vector<1x256xf32>
    %34 = arith.select %32, %24, %33 : vector<1x256xi1>, vector<1x256xf32>
    %c0_13 = arith.constant 0 : index
    %c0_14 = arith.constant 0 : index
    %35 = vector.load %arg6[%c0_13, %c0_14] : memref<1x256xf32, #tpu.memory_space<vmem>>, vector<1x256xf32>
    %36 = arith.addf %35, %34 : vector<1x256xf32>
    %c0_15 = arith.constant 0 : index
    %c0_16 = arith.constant 0 : index
    %37 = vector.load %arg6[%c0_15, %c0_16] : memref<1x256xf32, #tpu.memory_space<vmem>>, vector<1x256xf32>
    tpu.vector_store %arg6[%c0_15, %c0_16], %36 {strides = array<i32>} : memref<1x256xf32, #tpu.memory_space<vmem>>, vector<1x256xf32>,
    %c0_i32_17 = arith.constant 0 : i32
    %38 = arith.cmpi eq, %arg1, %c0_i32_17 : i32
    %c0_i32_18 = arith.constant 0 : i32
    %39 = arith.cmpi eq, %arg2, %c0_i32_18 : i32
    %40 = arith.andi %38, %39 : i1
    %41 = arith.extui %40 : i1 to i32
    %c0_i32_19 = arith.constant 0 : i32
    %42 = arith.cmpi ne, %41, %c0_i32_19 : i32
    scf.if %42 {
      %c0_20 = arith.constant 0 : index
      %c0_21 = arith.constant 0 : index
      %43 = vector.load %arg6[%c0_20, %c0_21] : memref<1x256xf32, #tpu.memory_space<vmem>>, vector<1x256xf32>
      %cst_22 = arith.constant dense<0.000000e+00> : vector<1xf32>
      %44 = vector.multi_reduction <add>, %43, %cst_22 [1] : vector<1x256xf32> to vector<1xf32>
      %45 = vector.shape_cast %44 : vector<1xf32> to vector<1x1xf32>
      %46 = vector.shape_cast %45 : vector<1x1xf32> to vector<1x1xf32>
      %47 = vector.broadcast %46 : vector<1x1xf32> to vector<1x128xf32>
      %c0_23 = arith.constant 0 : index
      %c0_24 = arith.constant 0 : index
      %c0_25 = arith.constant 0 : index
      %48 = vector.load %arg5[%c0_23, %c0_24, %c0_25] : memref<1x1x128xf32, #tpu.memory_space<vmem>>, vector<1x1x128xf32>
      %49 = vector.shape_cast %48 : vector<1x1x128xf32> to vector<1x128xf32>
      %50 = vector.shape_cast %47 : vector<1x128xf32> to vector<1x1x128xf32>
      tpu.vector_store %arg5[%c0_23, %c0_24, %c0_25], %50 {strides = array<i32>} : memref<1x1x128xf32, #tpu.memory_space<vmem>>, vector<1x1x128xf32>,
    } else {
    }
    return
  }
  func.func @transform_0(%arg0: i32, %arg1: i32, %arg2: i32) -> (i32, i32, i32) {
    %c1_i32 = arith.constant 1 : i32
    %0 = arith.muli %arg0, %c1_i32 : i32
    %1 = arith.addi %0, %arg1 : i32
    %c0_i32 = arith.constant 0 : i32
    %c0_i32_0 = arith.constant 0 : i32
    return %1, %c0_i32, %arg2 : i32, i32, i32
  }
  func.func @transform_1(%arg0: i32, %arg1: i32, %arg2: i32) -> (i32, i32, i32) {
    %c1_i32 = arith.constant 1 : i32
    %0 = arith.muli %arg0, %c1_i32 : i32
    %1 = arith.addi %0, %arg1 : i32
    %c0_i32 = arith.constant 0 : i32
    %c0_i32_0 = arith.constant 0 : i32
    return %1, %c0_i32, %arg2 : i32, i32, i32
  }
  func.func @transform_2(%arg0: i32, %arg1: i32, %arg2: i32) -> (i32, i32, i32) {
    %c0_i32 = arith.constant 0 : i32
    %c0_i32_0 = arith.constant 0 : i32
    %c0_i32_1 = arith.constant 0 : i32
    return %arg0, %c0_i32, %c0_i32_0 : i32, i32, i32
  }
}

</mosaic_0001>

<llo_original>
// kernel: cross_entropy_oh.1
$region0: #{cross_entropy_oh.1}
  #allocation0 [shape = 'u32[]', space=smem, size = 0x4, offset = 0x4, fixed_abs, tag = 'smem constant byte address 0x4 - core index']
  #allocation1 [shape = 'u32[72,128]{1,0:T(1,128)}', space=vmem, size = 0x9000, scoped, tag = 'internal scratch']
  #allocation2 [shape = 'f32[1,256]{1,0:T(1,128)}', space=vmem, size = 0x400, scoped, tag = 'scratch operand']
  %s0 = inlined_call_operand.vmem [shape: f32[2,4,256], index: 0, kind: input, shape index: {}]
  %s1 = inlined_call_operand.vmem [shape: f32[2,4,256], index: 1, kind: input, shape index: {}]
  %s2 = inlined_call_operand.vmem [shape: f32[2,1,128], index: 2, kind: output, shape index: {}]
  %s3 = sld [smem:[#allocation0]]
  $region49: #{cross_entropy_oh.1} parent=0
    _
  %s5 = ssub.s32 1, %s3
  %s6 = scalar_select 0, %s5, %s3
  loop: start=0, step=1, limit=4
  $region2: #{cross_entropy_oh.1} parent=0 // loop_pre_header
    _
  $region3: #{cross_entropy_oh.1} parent=0 // loop_header
    %s8 = sphi 0, %s12
    %p9 = scmp.ge.s32.totalorder %s8, 4
    %s15 = sphi 0, %s34
    %s16 = sphi 0, %s30
    %s17 = sphi 0, %s26
    %s18 = sphi 0, %s15
    %s19 = sphi 0, %s16
    %s20 = sphi 0, %s17
    %s21 = sphi 0, %s18
    %s22 = sphi 0, %s19
    %s23 = sphi 0, %s20
    %s41 = sphi 0, %s43
    %s44 = sphi 0, %s41
    %s45 = sphi 0, %s44
    %s61 = sphi 0, %s45
    %s71 = sphi 0, %s73
    %s74 = sphi 0, %s71
    %s75 = sphi 0, %s74
    %s91 = sphi 0, %s75
    %s97 = sphi 0, %s99
    %s100 = sphi 0, %s97
    %s101 = sphi 0, %s100
    %s117 = sphi 0, %s101
  $region4: #{cross_entropy_oh.1} parent=0 // loop_header_branch
    %11 = sbr.rel (%p9) target = $region8
  $region5: #{cross_entropy_oh.1} parent=0 // loop_body
    %s13 = ssub.s32 %s8, 1
    %s14 = ssub.s32 %s8, 2
    %s24 = sadd.s32 1, %s17
    %p25 = scmp.ge.s32.totalorder %s24, 1
    %s26 = scalar_select %p25, 0, %s24
    %s27 = sadd.s32 1, %s16
    %s28 = scalar_select %p25, %s27, %s16
    %p29 = scmp.ge.s32.totalorder %s28, 1
    %s30 = scalar_select %p29, 0, %s28
    %s31 = sadd.s32 1, %s15
    %s32 = scalar_select %p29, %s31, %s15
    %p33 = scmp.ge.s32.totalorder %s32, 2
    %s34 = scalar_select %p33, 0, %s32
    %s35 = sadd.s32 %s15, %s16
    %s36 = sadd.s32 %s34, %s30
    %s37 = ssub.s32 %s35, %s36
    %s38 = ssub.s32 %s17, %s26
    %s39 = sor.u32 %s37, %s38
    %p40 = scmp.eq.s32.totalorder %s39, 0
    %s42 = sadd.s32 %s41, 1
    %s43 = scalar_select %p40, %s41, %s42
    %p46 = pneg %p40
    %p47 = scmp.eq.s32.totalorder %s8, 1
    %p48 = por %p46, %p47
    %p49 = scmp.ne.s32.totalorder %s41, %s44
    %p50 = scmp.eq.s32.totalorder %s8, 0
    %p51 = por %p49, %p50
    %p52 = scmp.ne.s32.totalorder %s41, %s44
    %p53 = scmp.eq.s32.totalorder %s13, 1
    %p54 = por %p52, %p53
    %p55 = scmp.ne.s32.totalorder %s44, %s45
    %p56 = scmp.eq.s32.totalorder %s13, 0
    %p57 = por %p55, %p56
    %p58 = scmp.ne.s32.totalorder %s44, %s45
    %p59 = scmp.eq.s32.totalorder %s14, 1
    %p60 = por %p58, %p59
    %p62 = scmp.ne.s32.totalorder %s45, %s61
    %p63 = scmp.eq.s32.totalorder %s14, 0
    %p64 = por %p62, %p63
    %s65 = sadd.s32 %s15, %s16
    %s66 = sadd.s32 %s34, %s30
    %s67 = ssub.s32 %s65, %s66
    %s68 = ssub.s32 %s17, %s26
    %s69 = sor.u32 %s67, %s68
    %p70 = scmp.eq.s32.totalorder %s69, 0
    %s72 = sadd.s32 %s71, 1
    %s73 = scalar_select %p70, %s71, %s72
    %p76 = pneg %p70
    %p77 = scmp.eq.s32.totalorder %s8, 1
    %p78 = por %p76, %p77
    %p79 = scmp.ne.s32.totalorder %s71, %s74
    %p80 = scmp.eq.s32.totalorder %s8, 0
    %p81 = por %p79, %p80
    %p82 = scmp.ne.s32.totalorder %s71, %s74
    %p83 = scmp.eq.s32.totalorder %s13, 1
    %p84 = por %p82, %p83
    %p85 = scmp.ne.s32.totalorder %s74, %s75
    %p86 = scmp.eq.s32.totalorder %s13, 0
    %p87 = por %p85, %p86
    %p88 = scmp.ne.s32.totalorder %s74, %s75
    %p89 = scmp.eq.s32.totalorder %s14, 1
    %p90 = por %p88, %p89
    %p92 = scmp.ne.s32.totalorder %s75, %s91
    %p93 = scmp.eq.s32.totalorder %s14, 0
    %p94 = por %p92, %p93
    %s95 = ssub.s32 %s15, %s34
    %p96 = scmp.eq.s32.totalorder %s95, 0
    %s98 = sadd.s32 %s97, 1
    %s99 = scalar_select %p96, %s97, %s98
    %p102 = pneg %p96
    %p103 = scmp.eq.s32.totalorder %s8, 1
    %p104 = por %p102, %p103
    %p105 = scmp.ne.s32.totalorder %s97, %s100
    %p106 = scmp.eq.s32.totalorder %s8, 0
    %p107 = por %p105, %p106
    %p108 = scmp.ne.s32.totalorder %s97, %s100
    %p109 = scmp.eq.s32.totalorder %s13, 1
    %p110 = por %p108, %p109
    %p111 = scmp.ne.s32.totalorder %s100, %s101
    %p112 = scmp.eq.s32.totalorder %s13, 0
    %p113 = por %p111, %p112
    %p114 = scmp.ne.s32.totalorder %s100, %s101
    %p115 = scmp.eq.s32.totalorder %s14, 1
    %p116 = por %p114, %p115
    %p118 = scmp.ne.s32.totalorder %s101, %s117
    %p119 = scmp.eq.s32.totalorder %s14, 0
    %p120 = por %p118, %p119
    %p121 = scmp.le.s32.totalorder 1, %s8
    %p122 = scmp.lt.s32.totalorder %s8, 3
    %p123 = pnand %p121, %p122
    %p124 = pneg %p123
    // Predicated region
    $region9: #{cross_entropy_oh.1} parent=5 // pred_check
      _
    $region10: #{cross_entropy_oh.1} parent=5 // pred_check_branch
      %126 = sbr.rel (%p123) target = $region12
    $region11: #{cross_entropy_oh.1} parent=5 // pred_region
      %s127 = ssub.s32 %s8, 1
    $region12: #{cross_entropy_oh.1} parent=5 // pred_fallthru
      _
    %p128 = scmp.lt.s32.totalorder %s8, 2
    // Predicated region
    $region13: #{cross_entropy_oh.1} parent=5 // pred_check
      %p129 = pneg %p128
    $region14: #{cross_entropy_oh.1} parent=5 // pred_check_branch
      %131 = sbr.rel (%p129) target = $region16
    $region15: #{cross_entropy_oh.1} parent=5 // pred_region
      // Predicated region
      $region17: #{cross_entropy_oh.1} parent=15 // pred_check
        %p132 = pneg %p51
      $region18: #{cross_entropy_oh.1} parent=15 // pred_check_branch
        %134 = sbr.rel (%p132) target = $region20
      $region19: #{cross_entropy_oh.1} parent=15 // pred_region
        %s135 = sadd.s32 %s15, %s16
        %s136 = smul.u32 2, %s17
        %p137 = scmp.lt.s32.totalorder %s135, 1
        %s138 = scalar_select %p137, %s135, 1
        %p139 = scmp.lt.s32.totalorder %s136, 1
        %s140 = scalar_select %p139, %s136, 1
        %s141 = smul.addr %s138, 2
        %s142 = sadd.s32 %s140, %s141
        %s143 = smul.addr %s142, 4
        %s144 = scalar_lea.vmem %s0, %s143
        %s145 = sadd.s32 %s15, %s16
        %s146 = smul.u32 2, %s17
      $region20: #{cross_entropy_oh.1} parent=15 // pred_fallthru
        _
      // Predicated region
      $region21: #{cross_entropy_oh.1} parent=15 // pred_check
        %p147 = pneg %p81
      $region22: #{cross_entropy_oh.1} parent=15 // pred_check_branch
        %149 = sbr.rel (%p147) target = $region24
      $region23: #{cross_entropy_oh.1} parent=15 // pred_region
        %s150 = sadd.s32 %s15, %s16
        %s151 = smul.u32 2, %s17
        %p152 = scmp.lt.s32.totalorder %s150, 1
        %s153 = scalar_select %p152, %s150, 1
        %p154 = scmp.lt.s32.totalorder %s151, 1
        %s155 = scalar_select %p154, %s151, 1
        %s156 = smul.addr %s153, 2
        %s157 = sadd.s32 %s155, %s156
        %s158 = smul.addr %s157, 4
        %s159 = scalar_lea.vmem %s1, %s158
        %s160 = sadd.s32 %s15, %s16
        %s161 = smul.u32 2, %s17
      $region24: #{cross_entropy_oh.1} parent=15 // pred_fallthru
        _
    $region16: #{cross_entropy_oh.1} parent=5 // pred_fallthru
      _
    %p162 = scmp.le.s32.totalorder 1, %s8
    %p163 = scmp.lt.s32.totalorder %s8, 3
    %p164 = pnand %p162, %p163
    %p165 = pneg %p164
    // Predicated region
    $region25: #{cross_entropy_oh.1} parent=5 // pred_check
      _
    $region26: #{cross_entropy_oh.1} parent=5 // pred_check_branch
      %167 = sbr.rel (%p164) target = $region28
    $region27: #{cross_entropy_oh.1} parent=5 // pred_region
      %s168 = ssub.s32 %s8, 1
      %s169 = sadd.s32 %s18, %s19
      %s170 = smul.u32 2, %s20
      %p171 = scmp.lt.s32.totalorder %s169, 1
      %s172 = scalar_select %p171, %s169, 1
      %p173 = scmp.lt.s32.totalorder %s170, 1
      %s174 = scalar_select %p173, %s170, 1
      %s175 = smul.addr %s172, 2
      %s176 = sadd.s32 %s174, %s175
      %s177 = smul.addr %s176, 4
      %s178 = scalar_lea.vmem %s0, %s177
      %p179 = pneg %p57
      %p180 = pneg %p54
      %s181 = sadd.s32 %s18, %s19
      %s182 = smul.u32 2, %s20
      %p183 = scmp.lt.s32.totalorder %s181, 1
      %s184 = scalar_select %p183, %s181, 1
      %p185 = scmp.lt.s32.totalorder %s182, 1
      %s186 = scalar_select %p185, %s182, 1
      %s187 = smul.addr %s184, 2
      %s188 = sadd.s32 %s186, %s187
      %s189 = smul.addr %s188, 4
      %s190 = scalar_lea.vmem %s1, %s189
      %p191 = pneg %p87
      %p192 = pneg %p84
      %p193 = pneg %p113
      %p194 = pneg %p110
      %p195 = scmp.lt.s32.totalorder %s18, 1
      %s196 = scalar_select %p195, %s18, 1
      %s197 = scalar_lea.vmem %s2, %s196
      %s198 = sadd.s32 %s18, %s19
      %s199 = smul.u32 2, %s20
      %p200 = scmp.lt.s32.totalorder %s198, 1
      %s201 = scalar_select %p200, %s198, 1
      %p202 = scmp.lt.s32.totalorder %s199, 1
      %s203 = scalar_select %p202, %s199, 1
      %s204 = smul.addr %s201, 2
      %s205 = sadd.s32 %s203, %s204
      %s206 = smul.addr %s205, 4
      %s207 = scalar_lea.vmem %s0, %s206
      %s208 = sadd.s32 %s18, %s19
      %s209 = smul.u32 2, %s20
      %s210 = sadd.s32 %s18, %s19
      %s211 = smul.u32 2, %s20
      %p212 = scmp.lt.s32.totalorder %s210, 1
      %s213 = scalar_select %p212, %s210, 1
      %p214 = scmp.lt.s32.totalorder %s211, 1
      %s215 = scalar_select %p214, %s211, 1
      %s216 = smul.addr %s213, 2
      %s217 = sadd.s32 %s215, %s216
      %s218 = smul.addr %s217, 4
      %s219 = scalar_lea.vmem %s1, %s218
      %s220 = sadd.s32 %s18, %s19
      %s221 = smul.u32 2, %s20
      %p222 = scmp.lt.s32.totalorder %s18, 1
      %s223 = scalar_select %p222, %s18, 1
      %s224 = scalar_lea.vmem %s2, %s223
      %p225 = scmp.eq.s32.totalorder %s19, 0
      %p226 = scmp.eq.s32.totalorder %s20, 0
      %p227 = pnand %p225, %p226
      %p228 = pneg %p227
      // Predicated region
      $region29: #{cross_entropy_oh.1} parent=27 // pred_check
        _
      $region30: #{cross_entropy_oh.1} parent=27 // pred_check_branch
        %230 = sbr.rel (%p227) target = $region32
      $region31: #{cross_entropy_oh.1} parent=27 // pred_region
        %v231 = vlaneseq
        %vm232 = vcmp.ge.s32.totalorder %v231, 0
        %vm233 = vcmp.lt.s32.totalorder %v231, 256
        %vm234 = vmand %vm232, %vm233
        %235 = vst.msk [vmem:[#allocation2] sm:$0x3] %vm234, 0.0
      $region32: #{cross_entropy_oh.1} parent=27 // pred_fallthru
        _
      %v236 = vld [vmem:[%s207] sm:$0xff]
      %v237 = vld [vmem:[%s219] sm:$0xff]
      %239 = vst [vmem:[#allocation1] ss:$2 sm:$0xff] %v236
      %v240 = vld.sshfl [vmem:[#allocation1] sm:$0xff pattern:$0x75316420]
      %v241 = vld.sshfl [vmem:[#allocation1 + $0x8] sm:$0xff pattern:$0x75316420]
      %vm244 = vcmask 1043456
      %v245 = vsel %vm244, %v240, -inf
      %v246 = vrot.slane %v245, 4
      %v247 = vmax.f32 %v245, %v246
      %v248 = vrot.slane %v247, 2
      %v249 = vmax.f32 %v247, %v248
      %v250 = vrot.slane %v249, 1
      %v251 = vmax.f32 %v249, %v250
      %v252 = vsel %vm244, %v241, -inf
      %v253 = vrot.slane %v252, 4
      %v254 = vmax.f32 %v252, %v253
      %v255 = vrot.slane %v254, 2
      %v256 = vmax.f32 %v254, %v255
      %v257 = vrot.slane %v256, 1
      %v258 = vmax.f32 %v256, %v257
      %v261 = vrot.slane %v258, 4
      %v262 = vsel %vm244, %v251, %v261
      %v264 = vsub.f32 %v236, %v262
      %v265 = vmul.f32 %v264, 1.442695
      %v266 = vpow.pop %v265
      %268 = vst [vmem:[#allocation1] ss:$2 sm:$0xff] %v266
      %v269 = vld.sshfl [vmem:[#allocation1] sm:$0xff pattern:$0x75316420]
      %v270 = vld.sshfl [vmem:[#allocation1 + $0x8] sm:$0xff pattern:$0x75316420]
      %v273 = vsel %vm244, %v269, 0.0
      %v274 = vrot.slane %v273, 4
      %v275 = vadd.f32 %v273, %v274
      %v276 = vrot.slane %v275, 2
      %v277 = vadd.f32 %v275, %v276
      %v278 = vrot.slane %v277, 1
      %v279 = vadd.f32 %v277, %v278
      %v280 = vsel %vm244, %v270, 0.0
      %v281 = vrot.slane %v280, 4
      %v282 = vadd.f32 %v280, %v281
      %v283 = vrot.slane %v282, 2
      %v284 = vadd.f32 %v282, %v283
      %v285 = vrot.slane %v284, 1
      %v286 = vadd.f32 %v284, %v285
      %v287 = vlog2.pop %v279
      %v288 = vmul.f32 %v287, 0.6931472
      %v289 = vlog2.pop %v286
      %v290 = vmul.f32 %v289, 0.6931472
      %v291 = vadd.f32 %v251, %v288
      %v292 = vadd.f32 %v258, %v290
      %v293 = vmul.f32 %v236, %v237
      %295 = vst [vmem:[#allocation1] ss:$2 sm:$0xff] %v293
      %v296 = vld.sshfl [vmem:[#allocation1] sm:$0xff pattern:$0x75316420]
      %v297 = vld.sshfl [vmem:[#allocation1 + $0x8] sm:$0xff pattern:$0x75316420]
      %v300 = vsel %vm244, %v296, 0.0
      %v301 = vrot.slane %v300, 4
      %v302 = vadd.f32 %v300, %v301
      %v303 = vrot.slane %v302, 2
      %v304 = vadd.f32 %v302, %v303
      %v305 = vrot.slane %v304, 1
      %v306 = vadd.f32 %v304, %v305
      %v307 = vsel %vm244, %v297, 0.0
      %v308 = vrot.slane %v307, 4
      %v309 = vadd.f32 %v307, %v308
      %v310 = vrot.slane %v309, 2
      %v311 = vadd.f32 %v309, %v310
      %v312 = vrot.slane %v311, 1
      %v313 = vadd.f32 %v311, %v312
      %315 = vst [vmem:[#allocation1] ss:$2 sm:$0xff] %v237
      %v316 = vld.sshfl [vmem:[#allocation1] sm:$0xff pattern:$0x75316420]
      %v317 = vld.sshfl [vmem:[#allocation1 + $0x8] sm:$0xff pattern:$0x75316420]
      %v320 = vsel %vm244, %v316, 0.0
      %v321 = vrot.slane %v320, 4
      %v322 = vadd.f32 %v320, %v321
      %v323 = vrot.slane %v322, 2
      %v324 = vadd.f32 %v322, %v323
      %v325 = vrot.slane %v324, 1
      %v326 = vadd.f32 %v324, %v325
      %v327 = vsel %vm244, %v317, 0.0
      %v328 = vrot.slane %v327, 4
      %v329 = vadd.f32 %v327, %v328
      %v330 = vrot.slane %v329, 2
      %v331 = vadd.f32 %v329, %v330
      %v332 = vrot.slane %v331, 1
      %v333 = vadd.f32 %v331, %v332
      %v334 = vmul.f32 %v291, %v326
      %v335 = vmul.f32 %v292, %v333
      %v336 = vsub.f32 %v306, %v334
      %v337 = vsub.f32 %v313, %v335
      %s338 = smul.u32 %s20, 256
      %v339 = vlaneseq
      %v340 = vand.u32 %v339, 127
      %v341 = vadd.s32 %v340, 128
      %v342 = vstv %s338
      %v343 = vadd.s32 %v342, %v340
      %v344 = vadd.s32 %v342, %v341
      %vm345 = vcmp.lt.s32.totalorder %v343, 256
      %vm346 = vcmp.lt.s32.totalorder %v344, 256
      %v347 = vsel %vm345, %v336, 0.0
      %v348 = vsel %vm346, %v337, 0.0
      %v349 = vld [vmem:[#allocation2] sm:$0x3]
      %v352 = vrot.slane %v348, 7
      %vm353 = vcmask 1040384
      %v354 = vsel %vm353, %v347, %v352
      %v356 = vadd.f32 %v349, %v354
      %v357 = vlaneseq
      %vm358 = vcmp.ge.s32.totalorder %v357, 0
      %vm359 = vcmp.lt.s32.totalorder %v357, 256
      %vm360 = vmand %vm358, %vm359
      %361 = vst.msk [vmem:[#allocation2] sm:$0x3] %vm360, %v356
      // Predicated region
      $region33: #{cross_entropy_oh.1} parent=27 // pred_check
        _
      $region34: #{cross_entropy_oh.1} parent=27 // pred_check_branch
        %363 = sbr.rel (%p227) target = $region36
      $region35: #{cross_entropy_oh.1} parent=27 // pred_region
        %v364 = vld [vmem:[#allocation2] sm:$0x3]
        %v366 = vperm.slane %v364, 0
        %v367 = vperm.slane %v364, 1
        %v370 = vsel %vm353, %v366, 0.0
        %v371 = vsel %vm353, %v367, 0.0
        %v372 = vadd.f32 %v370, %v371
        %373 = vadd.xlane.f32.xlu0 %v372
        %v374 = vpop.xlane.xlu0 %373
        %375 = vst [vmem:[%s224] sm:$0x1] %v374
      $region36: #{cross_entropy_oh.1} parent=27 // pred_fallthru
        _
      %p376 = scmp.lt.s32.totalorder %s18, 1
      %s377 = scalar_select %p376, %s18, 1
      %s378 = scalar_lea.vmem %s2, %s377
      // Predicated region
      $region37: #{cross_entropy_oh.1} parent=27 // pred_check
        %p379 = pneg %p110
      $region38: #{cross_entropy_oh.1} parent=27 // pred_check_branch
        %381 = sbr.rel (%p379) target = $region40
      $region39: #{cross_entropy_oh.1} parent=27 // pred_region
        _
      $region40: #{cross_entropy_oh.1} parent=27 // pred_fallthru
        _
    $region28: #{cross_entropy_oh.1} parent=5 // pred_fallthru
      _
    %p382 = scmp.le.s32.totalorder 2, %s8
    // Predicated region
    $region41: #{cross_entropy_oh.1} parent=5 // pred_check
      %p383 = pneg %p382
    $region42: #{cross_entropy_oh.1} parent=5 // pred_check_branch
      %385 = sbr.rel (%p383) target = $region44
    $region43: #{cross_entropy_oh.1} parent=5 // pred_region
      %s386 = ssub.s32 %s8, 2
      // Predicated region
      $region45: #{cross_entropy_oh.1} parent=43 // pred_check
        %p387 = pneg %p116
      $region46: #{cross_entropy_oh.1} parent=43 // pred_check_branch
        %389 = sbr.rel (%p387) target = $region48
      $region47: #{cross_entropy_oh.1} parent=43 // pred_region
        %p390 = scmp.lt.s32.totalorder %s21, 1
        %s391 = scalar_select %p390, %s21, 1
        %s392 = scalar_lea.vmem %s2, %s391
      $region48: #{cross_entropy_oh.1} parent=43 // pred_fallthru
        _
    $region44: #{cross_entropy_oh.1} parent=5 // pred_fallthru
      _
  $region6: #{cross_entropy_oh.1} parent=0 // loop_footer
    %s12 = sadd.s32 1, %s8
  $region7: #{cross_entropy_oh.1} parent=0 // loop_footer_branch
    %7 = sbr.rel target = $region3
  $region8: #{cross_entropy_oh.1} parent=0 // loop_exit
    _

</llo_original>
